<compile_context>
chip_gen: v7x
topology: tpu7x:2x2x1
jax: 0.10.0
libtpu: 0.0.40
codegen_flags: <defaults>
</compile_context>

<pallas_src>
import numpy as np
import jax
import jax.numpy as jnp
from jax.experimental import pallas as pl
from jax.experimental.pallas import tpu as pltpu


def _patch_embed_matmul_kernel(p_ref, w_ref, b_ref, o_ref):
    # p_ref: (tile_m, K)   w_ref: (K, E)   b_ref: (1, E)   o_ref: (tile_m, E)
    acc = jnp.dot(p_ref[...], w_ref[...], preferred_element_type=jnp.float32)
    o_ref[...] = (acc + b_ref[...]).astype(o_ref.dtype)


def _round_up(x, m):
    return ((x + m - 1) // m) * m


def patch_embed_pallas(x, weight, bias, patch_size, *, tile_m=128):
    """x: (B, C_in, H, W); weight: (E, C_in, ph, pw) (PyTorch Conv2d layout); bias: (E,)."""
    ph, pw = patch_size
    B, C_in, H, W = x.shape
    E = weight.shape[0]

    # --- F.pad equivalent: zero-pad right/bottom to multiples of patch size ---
    pad_h = (-H) % ph
    pad_w = (-W) % pw
    if pad_h or pad_w:
        x = jnp.pad(x, ((0, 0), (0, 0), (0, pad_h), (0, pad_w)))
    Hp, Wp = H + pad_h, W + pad_w
    Ho, Wo = Hp // ph, Wp // pw

    # --- im2col for a kernel==stride conv: pure layout, no FLOPs ---
    # (B, C, Ho, ph, Wo, pw) -> (B, Ho, Wo, C, ph, pw) -> (M, K)   [K ordered (c, i, j)
    #  to match Conv2d's weight.reshape(E, C*ph*pw)]
    M = B * Ho * Wo
    K = C_in * ph * pw
    patches = x.reshape(B, C_in, Ho, ph, Wo, pw).transpose(0, 2, 4, 1, 3, 5)
    patches = patches.reshape(M, K)

    w_t = weight.reshape(E, K).T          # (K, E): kernel does a plain row-major GEMM
    b2 = bias.reshape(1, E)

    # --- tile the patch-row axis; pad M so the grid divides evenly ---
    tm = min(tile_m, _round_up(M, 8))     # sublane-aligned row tile
    M_pad = _round_up(M, tm)
    if M_pad != M:
        patches = jnp.pad(patches, ((0, M_pad - M), (0, 0)))
    grid = (M_pad // tm,)

    out = pl.pallas_call(
        _patch_embed_matmul_kernel,
        out_shape=jax.ShapeDtypeStruct((M_pad, E), x.dtype),
        grid_spec=pltpu.PrefetchScalarGridSpec(
            num_scalar_prefetch=0,
            grid=grid,
            in_specs=[
                pl.BlockSpec((tm, K), lambda i: (i, 0)),   # patch rows, tiled along M
                pl.BlockSpec((K, E), lambda i: (0, 0)),    # weight, resident in VMEM
                pl.BlockSpec((1, E), lambda i: (0, 0)),    # bias, resident in VMEM
            ],
            out_specs=pl.BlockSpec((tm, E), lambda i: (i, 0)),  # lane-dense when E % 128 == 0
        ),
        compiler_params=pltpu.CompilerParams(
            dimension_semantics=("parallel",)),
    )(patches, w_t, b2)

    out = out[:M].reshape(B, Ho * Wo, E)
    # TODO(synk): norm_layer defaults to None (Identity); a non-None LayerNorm is not fused here.
    return out, Ho, Wo


def reference_patch_embed(x, weight, bias, patch_size):
    """Pure-JAX mirror of the PyTorch forward (for correctness check)."""
    ph, pw = patch_size
    B, _, H, W = x.shape
    pad_h = (-H) % ph
    pad_w = (-W) % pw
    if pad_h or pad_w:
        x = jnp.pad(x, ((0, 0), (0, 0), (0, pad_h), (0, pad_w)))
    y = jax.lax.conv_general_dilated(
        x, weight, window_strides=(ph, pw), padding="VALID",
        dimension_numbers=("NCHW", "OIHW", "NCHW"))
    y = y + bias.reshape(1, -1, 1, 1)
    _, E, Ho, Wo = y.shape
    y = y.reshape(B, E, Ho * Wo).transpose(0, 2, 1)
    return y, Ho, Wo


if __name__ == "__main__":
    # Small config consistent with the module; H, W chosen non-divisible by the
    # patch size to exercise the padding branch. embed_dim=128 keeps the output
    # lane-dense (multiple of 128) per the performance review.
    patch_size = (4, 4)
    in_channels = 3
    embed_dim = 128
    B, H, W = 2, 34, 34   # padded to 36x36 -> Ho=Wo=9 -> M = 2*81 = 162 patch rows

    key = jax.random.PRNGKey(0)
    k_x, k_w, k_b = jax.random.split(key, 3)

    x = jax.random.normal(k_x, (B, in_channels, H, W), dtype=jnp.float32)
    fan_in = in_channels * patch_size[0] * patch_size[1]
    weight = (jax.random.normal(
        k_w, (embed_dim, in_channels, patch_size[0], patch_size[1]),
        dtype=jnp.float32) / np.sqrt(fan_in))
    bias = 0.02 * jax.random.normal(k_b, (embed_dim,), dtype=jnp.float32)

    out, Ho, Wo = patch_embed_pallas(x, weight, bias, patch_size)
    out = jax.block_until_ready(out)

    ref, Ho_ref, Wo_ref = reference_patch_embed(x, weight, bias, patch_size)
    assert (Ho, Wo) == (Ho_ref, Wo_ref), (Ho, Wo, Ho_ref, Wo_ref)
    np.testing.assert_allclose(np.asarray(out), np.asarray(ref), rtol=1e-4, atol=1e-4)

    print("KERNEL_OK")
</pallas_src>

<mosaic_0001>
module attributes {stable_mosaic.version = 11 : i64} {
  func.func @_patch_embed_matmul_kernel(%arg0: i32, %arg1: memref<128x48xf32, #tpu.memory_space<vmem>>, %arg2: memref<48x128xf32, #tpu.memory_space<vmem>>, %arg3: memref<1x128xf32, #tpu.memory_space<vmem>>, %arg4: memref<128x128xf32, #tpu.memory_space<vmem>>) attributes {dimension_semantics = [#tpu.dimension_semantics<parallel>], iteration_bounds = array<i64: 2>, scalar_prefetch = 0 : i64, scratch_operands = 0 : i64, tpu.core_type = #tpu.core_type<tc>, window_params = [{transform_indices = @transform_0, window_bounds = array<i64: 128, 48>}, {pipeline_mode = #tpu.pipeline_mode<synchronous>, transform_indices = @transform_1, window_bounds = array<i64: 48, 128>}, {pipeline_mode = #tpu.pipeline_mode<synchronous>, transform_indices = @transform_2, window_bounds = array<i64: 1, 128>}, {transform_indices = @transform_3, window_bounds = array<i64: 128, 128>}]} {
    %c0 = arith.constant 0 : index
    %c0_0 = arith.constant 0 : index
    %0 = vector.load %arg1[%c0, %c0_0] : memref<128x48xf32, #tpu.memory_space<vmem>>, vector<128x48xf32>
    %c0_1 = arith.constant 0 : index
    %c0_2 = arith.constant 0 : index
    %1 = vector.load %arg2[%c0_1, %c0_2] : memref<48x128xf32, #tpu.memory_space<vmem>>, vector<48x128xf32>
    %cst = arith.constant dense<0.000000e+00> : vector<128x128xf32>
    %2 = tpu.matmul %0, %1, %cst {dimension_numbers = #tpu.dot_dimension_numbers<[1], [0], [0], [1], [0, 0, 1, 1], [], []>} : vector<128x48xf32>, vector<48x128xf32>, vector<128x128xf32> -> vector<128x128xf32>
    %c0_3 = arith.constant 0 : index
    %c0_4 = arith.constant 0 : index
    %3 = vector.load %arg3[%c0_3, %c0_4] : memref<1x128xf32, #tpu.memory_space<vmem>>, vector<1x128xf32>
    %4 = vector.broadcast %3 : vector<1x128xf32> to vector<128x128xf32>
    %5 = arith.addf %2, %4 : vector<128x128xf32>
    %c0_5 = arith.constant 0 : index
    %c0_6 = arith.constant 0 : index
    %6 = vector.load %arg4[%c0_5, %c0_6] : memref<128x128xf32, #tpu.memory_space<vmem>>, vector<128x128xf32>
    tpu.vector_store %arg4[%c0_5, %c0_6], %5 {strides = array<i32>} : memref<128x128xf32, #tpu.memory_space<vmem>>, vector<128x128xf32>,
    return
  }
  func.func @transform_0(%arg0: i32) -> (i32, i32) {
    %c0_i32 = arith.constant 0 : i32
    %c0_i32_0 = arith.constant 0 : i32
    return %arg0, %c0_i32 : i32, i32
  }
  func.func @transform_1(%arg0: i32) -> (i32, i32) {
    %c0_i32 = arith.constant 0 : i32
    %c0_i32_0 = arith.constant 0 : i32
    %c0_i32_1 = arith.constant 0 : i32
    return %c0_i32, %c0_i32_0 : i32, i32
  }
  func.func @transform_2(%arg0: i32) -> (i32, i32) {
    %c0_i32 = arith.constant 0 : i32
    %c0_i32_0 = arith.constant 0 : i32
    %c0_i32_1 = arith.constant 0 : i32
    return %c0_i32, %c0_i32_0 : i32, i32
  }
  func.func @transform_3(%arg0: i32) -> (i32, i32) {
    %c0_i32 = arith.constant 0 : i32
    %c0_i32_0 = arith.constant 0 : i32
    return %arg0, %c0_i32 : i32, i32
  }
}

</mosaic_0001>

<llo_original>
// kernel: tpu_custom_call.1
$region0: #{tpu_custom_call.1}
  #allocation0 [shape = 'u32[]', space=smem, size = 0x4, offset = 0x4, fixed_abs, tag = 'smem constant byte address 0x4 - core index']
  #allocation1 [shape = 'u32[144,128]{1,0:T(1,128)}', space=vmem, size = 0x12000, scoped, tag = 'internal scratch']
  %s0 = inlined_call_operand.vmem [shape: f32[256,48], index: 0, kind: input, shape index: {}]
  %s1 = inlined_call_operand.vmem [shape: f32[48,128], index: 1, kind: input, shape index: {}]
  %s2 = inlined_call_operand.vmem [shape: f32[1,128], index: 2, kind: input, shape index: {}]
  %s3 = inlined_call_operand.hbm [shape: f32[256,128], index: 3, kind: output, shape index: {}]
  %s4 = sld [smem:[#allocation0]]
  $region45: #{tpu_custom_call.1} parent=0
    _
  %s6 = ssub.s32 1, %s4
  %s7 = scalar_select 0, %s6, %s4
  $region1: #{tpu_custom_call.1} parent=0
    #allocation2 [shape = 'u8[131072]{0}', space=vmem, size = 0x20000, scoped, tag = 'output window, operand 0']
    #allocation3 [shape = 's32[2]{0}', space=sflag, size = 0x8, scoped, tag = 'scoped memory for tpu_custom_call.1']
    %8 = vsyncpa [#allocation3], 0
    %s9 = scalar_lea.sflag [#allocation3], 1
    %10 = vsyncpa %s9, 0
    loop: start=0, step=1, limit=4
    $region2: #{tpu_custom_call.1} parent=1 // loop_pre_header
      _
    $region3: #{tpu_custom_call.1} parent=1 // loop_header
      %s12 = sphi 0, %s16
      %p13 = scmp.ge.s32.totalorder %s12, 4
      %s22 = sphi 0, %s24
      %s25 = sphi 0, %s22
      %s26 = sphi 0, %s25
      %s42 = sphi 0, %s26
      %s46 = sphi 0, %s46
      %s48 = sphi 0, %s46
      %s49 = sphi 0, %s48
      %s63 = sphi 0, %s49
      %s67 = sphi 0, %s67
      %s69 = sphi 0, %s67
      %s70 = sphi 0, %s69
      %s84 = sphi 0, %s70
      %s90 = sphi 0, %s92
      %s93 = sphi 0, %s90
      %s94 = sphi 0, %s93
      %s110 = sphi 0, %s94
    $region4: #{tpu_custom_call.1} parent=1 // loop_header_branch
      %15 = sbr.rel (%p13) target = $region8
    $region5: #{tpu_custom_call.1} parent=1 // loop_body
      %s17 = ssub.s32 %s12, 1
      %s18 = ssub.s32 %s12, 2
      %s19 = sadd.s32 %s12, 1
      %s20 = ssub.s32 %s12, %s19
      %p21 = scmp.eq.s32.totalorder %s20, 0
      %s23 = sadd.s32 %s22, 1
      %s24 = scalar_select %p21, %s22, %s23
      %p27 = pneg %p21
      %p28 = scmp.eq.s32.totalorder %s12, 1
      %p29 = por %p27, %p28
      %p30 = scmp.ne.s32.totalorder %s22, %s25
      %p31 = scmp.eq.s32.totalorder %s12, 0
      %p32 = por %p30, %p31
      %p33 = scmp.ne.s32.totalorder %s22, %s25
      %p34 = scmp.eq.s32.totalorder %s17, 1
      %p35 = por %p33, %p34
      %p36 = scmp.ne.s32.totalorder %s25, %s26
      %p37 = scmp.eq.s32.totalorder %s17, 0
      %p38 = por %p36, %p37
      %p39 = scmp.ne.s32.totalorder %s25, %s26
      %p40 = scmp.eq.s32.totalorder %s18, 1
      %p41 = por %p39, %p40
      %p43 = scmp.ne.s32.totalorder %s26, %s42
      %p44 = scmp.eq.s32.totalorder %s18, 0
      %p45 = por %p43, %p44
      %s47 = sadd.s32 %s46, 1
      %p50 = scmp.eq.s32.totalorder %s12, 1
      %p51 = scmp.ne.s32.totalorder %s46, %s48
      %p52 = scmp.eq.s32.totalorder %s12, 0
      %p53 = por %p51, %p52
      %p54 = scmp.ne.s32.totalorder %s46, %s48
      %p55 = scmp.eq.s32.totalorder %s17, 1
      %p56 = por %p54, %p55
      %p57 = scmp.ne.s32.totalorder %s48, %s49
      %p58 = scmp.eq.s32.totalorder %s17, 0
      %p59 = por %p57, %p58
      %p60 = scmp.ne.s32.totalorder %s48, %s49
      %p61 = scmp.eq.s32.totalorder %s18, 1
      %p62 = por %p60, %p61
      %p64 = scmp.ne.s32.totalorder %s49, %s63
      %p65 = scmp.eq.s32.totalorder %s18, 0
      %p66 = por %p64, %p65
      %s68 = sadd.s32 %s67, 1
      %p71 = scmp.eq.s32.totalorder %s12, 1
      %p72 = scmp.ne.s32.totalorder %s67, %s69
      %p73 = scmp.eq.s32.totalorder %s12, 0
      %p74 = por %p72, %p73
      %p75 = scmp.ne.s32.totalorder %s67, %s69
      %p76 = scmp.eq.s32.totalorder %s17, 1
      %p77 = por %p75, %p76
      %p78 = scmp.ne.s32.totalorder %s69, %s70
      %p79 = scmp.eq.s32.totalorder %s17, 0
      %p80 = por %p78, %p79
      %p81 = scmp.ne.s32.totalorder %s69, %s70
      %p82 = scmp.eq.s32.totalorder %s18, 1
      %p83 = por %p81, %p82
      %p85 = scmp.ne.s32.totalorder %s70, %s84
      %p86 = scmp.eq.s32.totalorder %s18, 0
      %p87 = por %p85, %p86
      %s88 = ssub.s32 %s12, %s19
      %p89 = scmp.eq.s32.totalorder %s88, 0
      %s91 = sadd.s32 %s90, 1
      %s92 = scalar_select %p89, %s90, %s91
      %p95 = pneg %p89
      %p96 = scmp.eq.s32.totalorder %s12, 1
      %p97 = por %p95, %p96
      %p98 = scmp.ne.s32.totalorder %s90, %s93
      %p99 = scmp.eq.s32.totalorder %s12, 0
      %p100 = por %p98, %p99
      %p101 = scmp.ne.s32.totalorder %s90, %s93
      %p102 = scmp.eq.s32.totalorder %s17, 1
      %p103 = por %p101, %p102
      %p104 = scmp.ne.s32.totalorder %s93, %s94
      %p105 = scmp.eq.s32.totalorder %s17, 0
      %p106 = por %p104, %p105
      %p107 = scmp.ne.s32.totalorder %s93, %s94
      %p108 = scmp.eq.s32.totalorder %s18, 1
      %p109 = por %p107, %p108
      %p111 = scmp.ne.s32.totalorder %s94, %s110
      %p112 = scmp.eq.s32.totalorder %s18, 0
      %p113 = por %p111, %p112
      %p114 = scmp.le.s32.totalorder 1, %s12
      %p115 = scmp.lt.s32.totalorder %s12, 3
      %p116 = pnand %p114, %p115
      %p117 = pneg %p116
      // Predicated region
      $region9: #{tpu_custom_call.1} parent=5 // pred_check
        _
      $region10: #{tpu_custom_call.1} parent=5 // pred_check_branch
        %119 = sbr.rel (%p116) target = $region12
      $region11: #{tpu_custom_call.1} parent=5 // pred_region
        %s120 = ssub.s32 %s12, 1
        // Predicated region
        $region13: #{tpu_custom_call.1} parent=11 // pred_check
          %p121 = pneg %p59
        $region14: #{tpu_custom_call.1} parent=11 // pred_check_branch
          %123 = sbr.rel (%p121) target = $region16
        $region15: #{tpu_custom_call.1} parent=11 // pred_region
          _
        $region16: #{tpu_custom_call.1} parent=11 // pred_fallthru
          _
        // Predicated region
        $region17: #{tpu_custom_call.1} parent=11 // pred_check
          %p124 = pneg %p80
        $region18: #{tpu_custom_call.1} parent=11 // pred_check_branch
          %126 = sbr.rel (%p124) target = $region20
        $region19: #{tpu_custom_call.1} parent=11 // pred_region
          _
        $region20: #{tpu_custom_call.1} parent=11 // pred_fallthru
          _
      $region12: #{tpu_custom_call.1} parent=5 // pred_fallthru
        _
      %p127 = scmp.lt.s32.totalorder %s12, 2
      // Predicated region
      $region21: #{tpu_custom_call.1} parent=5 // pred_check
        %p128 = pneg %p127
      $region22: #{tpu_custom_call.1} parent=5 // pred_check_branch
        %130 = sbr.rel (%p128) target = $region24
      $region23: #{tpu_custom_call.1} parent=5 // pred_region
        // Predicated region
        $region25: #{tpu_custom_call.1} parent=23 // pred_check
          %p131 = pneg %p32
        $region26: #{tpu_custom_call.1} parent=23 // pred_check_branch
          %133 = sbr.rel (%p131) target = $region28
        $region27: #{tpu_custom_call.1} parent=23 // pred_region
          %s134 = smul.u32 16, %s12
          %p135 = scmp.lt.s32.totalorder %s134, 31
          %s136 = scalar_select %p135, %s134, 31
          %s137 = smul.addr %s136, 8
          %s138 = scalar_lea.vmem %s0, %s137
          %s139 = smul.u32 16, %s12
        $region28: #{tpu_custom_call.1} parent=23 // pred_fallthru
          _
      $region24: #{tpu_custom_call.1} parent=5 // pred_fallthru
        _
      %p140 = scmp.le.s32.totalorder 1, %s12
      %p141 = scmp.lt.s32.totalorder %s12, 3
      %p142 = pnand %p140, %p141
      %p143 = pneg %p142
      // Predicated region
      $region29: #{tpu_custom_call.1} parent=5 // pred_check
        _
      $region30: #{tpu_custom_call.1} parent=5 // pred_check_branch
        %145 = sbr.rel (%p142) target = $region32
      $region31: #{tpu_custom_call.1} parent=5 // pred_region
        %s146 = ssub.s32 %s12, 1
        %s147 = smul.u32 16, %s17
        %p148 = scmp.lt.s32.totalorder %s147, 31
        %s149 = scalar_select %p148, %s147, 31
        %s150 = smul.addr %s149, 8
        %s151 = scalar_lea.vmem %s0, %s150
        %p152 = pneg %p38
        %p153 = pneg %p35
        %p154 = pneg %p59
        %p155 = pneg %p56
        %p156 = pneg %p80
        %p157 = pneg %p77
        %p158 = pneg %p106
        %p159 = pneg %p103
        %s160 = sand.u32 %s93, 1
        %s161 = scalar_lea.sflag [#allocation3], %s160
        %s162 = sand.u32 %s93, 1
        %s163 = smul.addr %s162, 128
        %s164 = scalar_lea.vmem [#allocation2], %s163
        %s165 = smul.u32 16, %s17
        %p166 = scmp.lt.s32.totalorder %s165, 31
        %s167 = scalar_select %p166, %s165, 31
        %s168 = smul.addr %s167, 8
        %s169 = scalar_lea.vmem %s0, %s168
        %s170 = smul.u32 16, %s17
        %s171 = smul.u32 16, %s17
        %v172 = vld [vmem:[%s169] sm:$0xff]
        %v173 = vld [vmem:[%s169 + $0x8] sm:$0xff]
        %v174 = vld [vmem:[%s169 + $0x10] sm:$0xff]
        %v175 = vld [vmem:[%s169 + $0x18] sm:$0xff]
        %v176 = vld [vmem:[%s169 + $0x20] sm:$0xff]
        %v177 = vld [vmem:[%s169 + $0x28] sm:$0xff]
        %v178 = vld [vmem:[%s169 + $0x30] sm:$0xff]
        %v179 = vld [vmem:[%s169 + $0x38] sm:$0xff]
        %v180 = vld [vmem:[%s169 + $0x40] sm:$0xff]
        %v181 = vld [vmem:[%s169 + $0x48] sm:$0xff]
        %v182 = vld [vmem:[%s169 + $0x50] sm:$0xff]
        %v183 = vld [vmem:[%s169 + $0x58] sm:$0xff]
        %v184 = vld [vmem:[%s169 + $0x60] sm:$0xff]
        %v185 = vld [vmem:[%s169 + $0x68] sm:$0xff]
        %v186 = vld [vmem:[%s169 + $0x70] sm:$0xff]
        %v187 = vld [vmem:[%s169 + $0x78] sm:$0xff]
        %v188 = vld [vmem:[%s1] sm:$0xff]
        %v189 = vld [vmem:[%s1 + $0x8] sm:$0xff]
        %v190 = vld [vmem:[%s1 + $0x10] sm:$0xff]
        %v191 = vld [vmem:[%s1 + $0x18] sm:$0xff]
        %v192 = vld [vmem:[%s1 + $0x20] sm:$0xff]
        %v193 = vld [vmem:[%s1 + $0x28] sm:$0xff]
        %v194 = vld [vmem:[%s2] sm:$0x1]
        %v196 = vlaneseq
        %v197 = vshrl.u32 %v196, 7
        %v198 = vsub.s32 0, %v197
        %v199 = vrot.slane %v194, %v198
        %vm201 = vcmask 392192
        %v203 = vsel %vm201, %v172, 0
        %v206 = vsel %vm201, %v173, 0
        %v209 = vsel %vm201, %v174, 0
        %v212 = vsel %vm201, %v175, 0
        %v215 = vsel %vm201, %v176, 0
        %v218 = vsel %vm201, %v177, 0
        %v221 = vsel %vm201, %v178, 0
        %v224 = vsel %vm201, %v179, 0
        %v227 = vsel %vm201, %v180, 0
        %v230 = vsel %vm201, %v181, 0
        %v233 = vsel %vm201, %v182, 0
        %v236 = vsel %vm201, %v183, 0
        %v239 = vsel %vm201, %v184, 0
        %v242 = vsel %vm201, %v185, 0
        %v245 = vsel %vm201, %v186, 0
        %v248 = vsel %vm201, %v187, 0
        %250 = vmatprep.subr.mxu0 0.0
        %251 = vmatpush1.msra.mxu0 %v188
        %252 = vmatprep.subr.mxu0 0.0
        %253 = vmatpush1.msra.mxu0 %v189
        %254 = vmatprep.subr.mxu0 0.0
        %255 = vmatpush1.msra.mxu0 %v190
        %256 = vmatprep.subr.mxu0 0.0
        %257 = vmatpush1.msra.mxu0 %v191
        %258 = vmatprep.subr.mxu0 0.0
        %259 = vmatpush1.msra.mxu0 %v192
        %260 = vmatprep.subr.mxu0 0.0
        %261 = vmatpush1.msra.mxu0 %v193
        %262 = vmatprep.subr.mxu0 0.0
        %263 = vmatpush1.msra.mxu0 0.0
        %264 = vmatprep.subr.mxu0 0.0
        %265 = vmatpush1.msra.mxu0 0.0
        %266 = vmatprep.subr.mxu0 0.0
        %267 = vmatpush1.msra.mxu0 0.0
        %268 = vmatprep.subr.mxu0 0.0
        %269 = vmatpush1.msra.mxu0 0.0
        %270 = vmatprep.subr.mxu0 0.0
        %271 = vmatpush1.msra.mxu0 0.0
        %272 = vmatprep.subr.mxu0 0.0
        %273 = vmatpush1.msra.mxu0 0.0
        %274 = vmatprep.subr.mxu0 0.0
        %275 = vmatpush1.msra.mxu0 0.0
        %276 = vmatprep.subr.mxu0 0.0
        %277 = vmatpush1.msra.mxu0 0.0
        %278 = vmatprep.subr.mxu0 0.0
        %279 = vmatpush1.msra.mxu0 0.0
        %280 = vmatprep.subr.mxu0 0.0
        %281 = vmatpush1.msra.mxu0 0.0
        %282 = vmatprep.subr.mxu0 0.0
        %283 = vmatpush1.msra.mxu0 0.0
        %284 = vmatprep.subr.mxu0 0.0
        %285 = vmatpush1.msra.mxu0 0.0
        %286 = vmatprep.subr.mxu0 0.0
        %287 = vmatpush1.msra.mxu0 0.0
        %288 = vmatprep.subr.mxu0 0.0
        %289 = vmatpush1.msra.mxu0 0.0
        %290 = vmatprep.subr.mxu0 0.0
        %291 = vmatpush1.msra.mxu0 0.0
        %292 = vmatprep.subr.mxu0 0.0
        %293 = vmatpush1.msra.mxu0 0.0
        %294 = vmatprep.subr.mxu0 0.0
        %295 = vmatpush1.msra.mxu0 0.0
        %296 = vmatprep.subr.mxu0 0.0
        %297 = vmatpush1.msra.mxu0 0.0
        %298 = vmatprep.subr.mxu0 0.0
        %299 = vmatpush1.msra.mxu0 0.0
        %300 = vmatprep.subr.mxu0 0.0
        %301 = vmatpush1.msra.mxu0 0.0
        %302 = vmatprep.subr.mxu0 0.0
        %303 = vmatpush1.msra.mxu0 0.0
        %304 = vmatprep.subr.mxu0 0.0
        %305 = vmatpush1.msra.mxu0 0.0
        %306 = vmatprep.subr.mxu0 0.0
        %307 = vmatpush1.msra.mxu0 0.0
        %308 = vmatprep.subr.mxu0 0.0
        %309 = vmatpush1.msra.mxu0 0.0
        %310 = vmatprep.subr.mxu0 0.0
        %311 = vmatpush1.msra.mxu0 0.0
        %312 = vmatprep.subr.mxu0 0.0
        %313 = vmatpush1.msra.mxu0 0.0
        %314 = vmatprep.mubr.f32.mxu0 0.0
        %315 = vmatmul.mubr.f32.gmra.mrb[0].mxu0 %v203
        %v316 = vpop.f32.mrb[0].mxu0
        %v317 = vadd.f32 %v199, %v316
        %v318 = vpop.f32.mrb[0].mxu0
        %319 = vmatprep.mubr.f32.mxu0 0.0
        %320 = vmatmul.mubr.f32.gmra.mrb[0].mxu0 %v206
        %v321 = vpop.f32.mrb[0].mxu0
        %v322 = vadd.f32 %v199, %v321
        %v323 = vpop.f32.mrb[0].mxu0
        %324 = vmatprep.mubr.f32.mxu0 0.0
        %325 = vmatmul.mubr.f32.gmra.mrb[0].mxu0 %v209
        %v326 = vpop.f32.mrb[0].mxu0
        %v327 = vadd.f32 %v199, %v326
        %v328 = vpop.f32.mrb[0].mxu0
        %329 = vmatprep.mubr.f32.mxu0 0.0
        %330 = vmatmul.mubr.f32.gmra.mrb[0].mxu0 %v212
        %v331 = vpop.f32.mrb[0].mxu0
        %v332 = vadd.f32 %v199, %v331
        %v333 = vpop.f32.mrb[0].mxu0
        %334 = vmatprep.mubr.f32.mxu0 0.0
        %335 = vmatmul.mubr.f32.gmra.mrb[0].mxu0 %v215
        %v336 = vpop.f32.mrb[0].mxu0
        %v337 = vadd.f32 %v199, %v336
        %v338 = vpop.f32.mrb[0].mxu0
        %339 = vmatprep.mubr.f32.mxu0 0.0
        %340 = vmatmul.mubr.f32.gmra.mrb[0].mxu0 %v218
        %v341 = vpop.f32.mrb[0].mxu0
        %v342 = vadd.f32 %v199, %v341
        %v343 = vpop.f32.mrb[0].mxu0
        %344 = vmatprep.mubr.f32.mxu0 0.0
        %345 = vmatmul.mubr.f32.gmra.mrb[0].mxu0 %v221
        %v346 = vpop.f32.mrb[0].mxu0
        %v347 = vadd.f32 %v199, %v346
        %v348 = vpop.f32.mrb[0].mxu0
        %349 = vmatprep.mubr.f32.mxu0 0.0
        %350 = vmatmul.mubr.f32.gmra.mrb[0].mxu0 %v224
        %v351 = vpop.f32.mrb[0].mxu0
        %v352 = vadd.f32 %v199, %v351
        %v353 = vpop.f32.mrb[0].mxu0
        %354 = vmatprep.mubr.f32.mxu0 0.0
        %355 = vmatmul.mubr.f32.gmra.mrb[0].mxu0 %v227
        %v356 = vpop.f32.mrb[0].mxu0
        %v357 = vadd.f32 %v199, %v356
        %v358 = vpop.f32.mrb[0].mxu0
        %359 = vmatprep.mubr.f32.mxu0 0.0
        %360 = vmatmul.mubr.f32.gmra.mrb[0].mxu0 %v230
        %v361 = vpop.f32.mrb[0].mxu0
        %v362 = vadd.f32 %v199, %v361
        %v363 = vpop.f32.mrb[0].mxu0
        %364 = vmatprep.mubr.f32.mxu0 0.0
        %365 = vmatmul.mubr.f32.gmra.mrb[0].mxu0 %v233
        %v366 = vpop.f32.mrb[0].mxu0
        %v367 = vadd.f32 %v199, %v366
        %v368 = vpop.f32.mrb[0].mxu0
        %369 = vmatprep.mubr.f32.mxu0 0.0
        %370 = vmatmul.mubr.f32.gmra.mrb[0].mxu0 %v236
        %v371 = vpop.f32.mrb[0].mxu0
        %v372 = vadd.f32 %v199, %v371
        %v373 = vpop.f32.mrb[0].mxu0
        %374 = vmatprep.mubr.f32.mxu0 0.0
        %375 = vmatmul.mubr.f32.gmra.mrb[0].mxu0 %v239
        %v376 = vpop.f32.mrb[0].mxu0
        %v377 = vadd.f32 %v199, %v376
        %v378 = vpop.f32.mrb[0].mxu0
        %379 = vmatprep.mubr.f32.mxu0 0.0
        %380 = vmatmul.mubr.f32.gmra.mrb[0].mxu0 %v242
        %v381 = vpop.f32.mrb[0].mxu0
        %v382 = vadd.f32 %v199, %v381
        %v383 = vpop.f32.mrb[0].mxu0
        %384 = vmatprep.mubr.f32.mxu0 0.0
        %385 = vmatmul.mubr.f32.gmra.mrb[0].mxu0 %v245
        %v386 = vpop.f32.mrb[0].mxu0
        %v387 = vadd.f32 %v199, %v386
        %v388 = vpop.f32.mrb[0].mxu0
        %389 = vmatprep.mubr.f32.mxu0 0.0
        %390 = vmatmul.mubr.f32.gmra.mrb[0].mxu0 %v248
        %v391 = vpop.f32.mrb[0].mxu0
        %v392 = vadd.f32 %v199, %v391
        %v393 = vpop.f32.mrb[0].mxu0
        %394 = vdwg.mxu0
        %395 = vst [vmem:[%s164] sm:$0xff] %v317
        %396 = vst [vmem:[%s164 + $0x8] sm:$0xff] %v322
        %397 = vst [vmem:[%s164 + $0x10] sm:$0xff] %v327
        %398 = vst [vmem:[%s164 + $0x18] sm:$0xff] %v332
        %399 = vst [vmem:[%s164 + $0x20] sm:$0xff] %v337
        %400 = vst [vmem:[%s164 + $0x28] sm:$0xff] %v342
        %401 = vst [vmem:[%s164 + $0x30] sm:$0xff] %v347
        %402 = vst [vmem:[%s164 + $0x38] sm:$0xff] %v352
        %403 = vst [vmem:[%s164 + $0x40] sm:$0xff] %v357
        %404 = vst [vmem:[%s164 + $0x48] sm:$0xff] %v362
        %405 = vst [vmem:[%s164 + $0x50] sm:$0xff] %v367
        %406 = vst [vmem:[%s164 + $0x58] sm:$0xff] %v372
        %407 = vst [vmem:[%s164 + $0x60] sm:$0xff] %v377
        %408 = vst [vmem:[%s164 + $0x68] sm:$0xff] %v382
        %409 = vst [vmem:[%s164 + $0x70] sm:$0xff] %v387
        %410 = vst [vmem:[%s164 + $0x78] sm:$0xff] %v392
        %s411 = sand.u32 %s93, 1
        %s412 = scalar_lea.sflag [#allocation3], %s411
        %s413 = sand.u32 %s93, 1
        %s414 = smul.addr %s413, 128
        %s415 = scalar_lea.vmem [#allocation2], %s414
        // Predicated region
        $region33: #{tpu_custom_call.1} parent=31 // pred_check
          %p416 = pneg %p103
        $region34: #{tpu_custom_call.1} parent=31 // pred_check_branch
          %418 = sbr.rel (%p416) target = $region36
        $region35: #{tpu_custom_call.1} parent=31 // pred_region
          %s419 = smul.u32 16, %s17
          %s421 = ssub.s32 2048, 2048
          %422 = vsyncadd %s412, %s421
          %s423 = smul.addr %s419, 128
          %s424 = scalar_lea.hbm %s3, %s423
          %s425 = sshll.u32 %s415, 4
          %s426 = int_to_ptr.vmem [resolvable:$true] %s425
          %431 = dma.vmem_to_hbm [thread:$0]  %s426, 2048, %s424, %s412, 128, 128, 8
        $region36: #{tpu_custom_call.1} parent=31 // pred_fallthru
          _
      $region32: #{tpu_custom_call.1} parent=5 // pred_fallthru
        _
      %p432 = scmp.le.s32.totalorder 2, %s12
      // Predicated region
      $region37: #{tpu_custom_call.1} parent=5 // pred_check
        %p433 = pneg %p432
      $region38: #{tpu_custom_call.1} parent=5 // pred_check_branch
        %435 = sbr.rel (%p433) target = $region40
      $region39: #{tpu_custom_call.1} parent=5 // pred_region
        %s436 = ssub.s32 %s12, 2
        // Predicated region
        $region41: #{tpu_custom_call.1} parent=39 // pred_check
          %p437 = pneg %p109
        $region42: #{tpu_custom_call.1} parent=39 // pred_check_branch
          %439 = sbr.rel (%p437) target = $region44
        $region43: #{tpu_custom_call.1} parent=39 // pred_region
          %s440 = sand.u32 %s94, 1
          %s441 = scalar_lea.sflag [#allocation3], %s440
          %s442 = sand.u32 %s94, 1
          %s443 = smul.addr %s442, 128
          %s444 = scalar_lea.vmem [#allocation2], %s443
          %445 = dma.done %s441, 2048
        $region44: #{tpu_custom_call.1} parent=39 // pred_fallthru
          _
      $region40: #{tpu_custom_call.1} parent=5 // pred_fallthru
        _
    $region6: #{tpu_custom_call.1} parent=1 // loop_footer
      %s16 = sadd.s32 1, %s12
    $region7: #{tpu_custom_call.1} parent=1 // loop_footer_branch
      %11 = sbr.rel target = $region3
    $region8: #{tpu_custom_call.1} parent=1 // loop_exit
      _
    %446 = vsyncpa [#allocation3], 1
    %s447 = scalar_lea.sflag [#allocation3], 1
    %448 = vsyncpa %s447, 1

</llo_original>
